<compile_context>
chip_gen: v5e
topology: v5e:2x2
jax: 0.10.0
libtpu: 0.0.40
codegen_flags: <defaults>
</compile_context>

<pallas_src>
import functools
import math

import jax
import jax.numpy as jnp
from jax.experimental import pallas as pl
from jax.experimental.pallas import tpu as pltpu


def _brain_kernel(x_ref, w1_ref, b1_ref, w2_ref, b2_ref, out_ref, *, mxu_dtype):
    # x_ref:  (TB, D_in) native dtype      w1_ref: (D_in, H) already in mxu_dtype
    # b1_ref: (1, H) f32                   w2_ref: (H, A) f32    b2_ref: (1, A) f32
    # out_ref: (TB, A) f32
    # In-kernel cast (mirrors PyTorch obs.float()); hides under the tile DMA and
    # lets the caller keep obs narrow (bf16/uint8) in HBM.
    x = x_ref[...].astype(mxu_dtype)
    # First matmul on the MXU, f32 accumulation.
    h = jnp.dot(x, w1_ref[...], preferred_element_type=jnp.float32)
    # Bias + ReLU in f32 on the VPU (v5e has no bf16 VPU).
    h = jnp.maximum(h + b1_ref[...], 0.0)
    # Second matmul kept in f32 (tiny N=A; precision-safe, negligible cost).
    out_ref[...] = (
        jnp.dot(h, w2_ref[...], preferred_element_type=jnp.float32) + b2_ref[...]
    )


def _pick_batch_tile(B, d_in, hidden, num_actions, act_bytes, block_batch, vmem_target):
    """Largest batch tile that fits the working set in `vmem_target` bytes."""
    # Per-row bytes in the pipelined working set:
    #   2x double-buffered x tile + 2x double-buffered out tile + f32 hidden temp.
    per_row = 2 * d_in * act_bytes + 2 * num_actions * 4 + hidden * 4
    weight_bytes = 4 * (d_in * hidden + hidden + hidden * num_actions + num_actions)
    tb_budget = max(8, (vmem_target - weight_bytes) // per_row)
    tb = int(min(B, block_batch, tb_budget))
    if tb < B:
        # Strict tile: keep it sublane-aligned (divisible by 8). tb == B is
        # always legal (block equals full array dim), no rounding needed.
        tb = max(8, (tb // 8) * 8)
    return tb, weight_bytes, per_row


def brain_forward(obs, w1, b1, w2, b2, *, mxu_dtype=jnp.float32,
                  block_batch=16384, vmem_target=40 << 20):
    """Q-values for each action.

    obs: (B, H, W), any numeric dtype -- pass bf16/uint8 to halve/quarter the
         dominant HBM read traffic; the cast to `mxu_dtype` happens in-kernel.
    Weights are stored (in, out): y = relu(x @ w1 + b1) @ w2 + b2, matching the
    PyTorch Linear layers (which store (out, in) and compute x @ W.T).
    """
    B = obs.shape[0]
    d_in = math.prod(obs.shape[1:])
    x = obs.reshape(B, d_in)                  # nn.Flatten(); contiguous, native dtype
    hidden = w1.shape[1]
    num_actions = w2.shape[1]

    # One-off wrapper-side casts of the tiny, VMEM-resident params (avoids a
    # per-grid-step VPU cast of a weight that never changes).
    w1_k = w1 if w1.dtype == mxu_dtype else w1.astype(mxu_dtype)
    w2_k = w2.astype(jnp.float32)
    b1_2d = b1.reshape(1, hidden).astype(jnp.float32)
    b2_2d = b2.reshape(1, num_actions).astype(jnp.float32)

    act_bytes = x.dtype.itemsize
    tb, weight_bytes, per_row = _pick_batch_tile(
        B, d_in, hidden, num_actions, act_bytes, block_batch, vmem_target)
    num_tiles = pl.cdiv(B, tb)                # ragged edge block masked by Pallas

    # VMEM limit derived from the actual working set (incl. the h intermediate),
    # with headroom; capped at 48 MiB so v7x (64 MiB physical) keeps slack for
    # compiler-internal scratch.
    working_set = tb * per_row + weight_bytes
    vmem_limit = int(1.25 * working_set) + (2 << 20)
    vmem_limit = max(4 << 20, min(vmem_limit, 48 << 20))

    cost = pl.CostEstimate(
        flops=2 * B * (d_in * hidden + hidden * num_actions),
        transcendentals=0,
        bytes_accessed=(
            B * d_in * act_bytes
            + weight_bytes
            + B * num_actions * 4
        ),
    )

    kernel = functools.partial(_brain_kernel, mxu_dtype=mxu_dtype)

    out = pl.pallas_call(
        kernel,
        out_shape=jax.ShapeDtypeStruct((B, num_actions), jnp.float32),
        grid=(num_tiles,),
        in_specs=[
            pl.BlockSpec((tb, d_in), lambda i: (i, 0)),            # streamed batch tiles
            pl.BlockSpec((d_in, hidden), lambda i: (0, 0)),        # VMEM-resident weights
            pl.BlockSpec((1, hidden), lambda i: (0, 0)),
            pl.BlockSpec((hidden, num_actions), lambda i: (0, 0)),
            pl.BlockSpec((1, num_actions), lambda i: (0, 0)),
        ],
        out_specs=pl.BlockSpec((tb, num_actions), lambda i: (i, 0)),
        compiler_params=pltpu.CompilerParams(
            dimension_semantics=("parallel",),   # batch tiles independent
            vmem_limit_bytes=vmem_limit,
        ),
        cost_estimate=cost,
    )(x, w1_k, b1_2d, w2_k, b2_2d)

    return out


def init_brain_params(key, obs_shape, num_actions, hidden_dim=128):
    """Deterministic parameter init (PyTorch-Linear-like uniform bounds)."""
    d_in = obs_shape[0] * obs_shape[1]
    k1, k2, k3, k4 = jax.random.split(key, 4)
    bound1 = 1.0 / jnp.sqrt(d_in)
    bound2 = 1.0 / jnp.sqrt(hidden_dim)
    # Stored as (in, out) so the kernel does x @ W (equivalent to torch x @ W.T).
    w1 = jax.random.uniform(k1, (d_in, hidden_dim), jnp.float32, -bound1, bound1)
    b1 = jax.random.uniform(k2, (hidden_dim,), jnp.float32, -bound1, bound1)
    w2 = jax.random.uniform(k3, (hidden_dim, num_actions), jnp.float32, -bound2, bound2)
    b2 = jax.random.uniform(k4, (num_actions,), jnp.float32, -bound2, bound2)
    return w1, b1, w2, b2


if __name__ == "__main__":
    # Shapes consistent with the module: obs_shape=(8, 8), 4 actions,
    # hidden_dim=128 (module default; also lane-dense for the hidden activations).
    obs_shape = (8, 8)
    num_actions = 4
    hidden_dim = 128
    batch = 2

    key = jax.random.PRNGKey(0)
    k_obs, k_params, k_big = jax.random.split(key, 3)

    obs = jax.random.normal(k_obs, (batch, *obs_shape), jnp.float32)
    w1, b1, w2, b2 = init_brain_params(k_params, obs_shape, num_actions, hidden_dim)

    def ref_fn(o):
        xf = o.reshape(o.shape[0], -1).astype(jnp.float32)
        return jnp.maximum(xf @ w1 + b1, 0.0) @ w2 + b2

    # Small-batch path (single grid point, tb == B).
    q_values = brain_forward(obs, w1, b1, w2, b2)
    jax.block_until_ready(q_values)
    assert q_values.shape == (batch, num_actions)
    assert jnp.allclose(q_values, ref_fn(obs), atol=1e-3, rtol=1e-3)

    # Multi-tile ragged path: grid = cdiv(1040, 512) = 3; NO wrapper pad, the
    # 16-row edge block is masked by Pallas on store.
    big_batch = 1040
    obs_big = jax.random.normal(k_big, (big_batch, *obs_shape), jnp.float32)
    q_big = brain_forward(obs_big, w1, b1, w2, b2, block_batch=512)
    jax.block_until_ready(q_big)
    assert q_big.shape == (big_batch, num_actions)
    assert jnp.allclose(q_big, ref_fn(obs_big), atol=1e-3, rtol=1e-3)

    # bf16-at-HBM path: obs stored in bf16 halves the dominant x read traffic;
    # bf16 MXU matmul with f32 accumulation (loose tolerance for bf16 mantissa).
    q_bf16 = brain_forward(obs_big.astype(jnp.bfloat16), w1, b1, w2, b2,
                           mxu_dtype=jnp.bfloat16, block_batch=512)
    jax.block_until_ready(q_bf16)
    assert q_bf16.shape == (big_batch, num_actions)
    assert jnp.allclose(q_bf16, ref_fn(obs_big), atol=5e-2, rtol=5e-2)

    # Greedy half of select_action (argmax over 4 values; plain JAX).
    actions = jnp.argmax(q_big, axis=-1)
    jax.block_until_ready(actions)
    assert actions.shape == (big_batch,)

    # TODO(synk): select_action's epsilon-greedy branch is host-level RNG control
    # flow plus an argmax over 4 values; not worth a Pallas kernel.
    print("KERNEL_OK")
</pallas_src>

<mosaic_0001>
module attributes {stable_mosaic.version = 11 : i64} {
  func.func @_brain_kernel(%arg0: i32, %arg1: memref<2x64xf32, #tpu.memory_space<vmem>>, %arg2: memref<64x128xf32, #tpu.memory_space<vmem>>, %arg3: memref<1x128xf32, #tpu.memory_space<vmem>>, %arg4: memref<128x4xf32, #tpu.memory_space<vmem>>, %arg5: memref<1x4xf32, #tpu.memory_space<vmem>>, %arg6: memref<2x4xf32, #tpu.memory_space<vmem>>) attributes {dimension_semantics = [#tpu.dimension_semantics<parallel>], iteration_bounds = array<i64: 1>, scalar_prefetch = 0 : i64, scratch_operands = 0 : i64, tpu.core_type = #tpu.core_type<tc>, window_params = [{transform_indices = @transform_0, window_bounds = array<i64: 2, 64>}, {pipeline_mode = #tpu.pipeline_mode<synchronous>, transform_indices = @transform_1, window_bounds = array<i64: 64, 128>}, {pipeline_mode = #tpu.pipeline_mode<synchronous>, transform_indices = @transform_2, window_bounds = array<i64: 1, 128>}, {pipeline_mode = #tpu.pipeline_mode<synchronous>, transform_indices = @transform_3, window_bounds = array<i64: 128, 4>}, {pipeline_mode = #tpu.pipeline_mode<synchronous>, transform_indices = @transform_4, window_bounds = array<i64: 1, 4>}, {transform_indices = @transform_5, window_bounds = array<i64: 2, 4>}]} {
    %c0 = arith.constant 0 : index
    %c0_0 = arith.constant 0 : index
    %0 = vector.load %arg1[%c0, %c0_0] : memref<2x64xf32, #tpu.memory_space<vmem>>, vector<2x64xf32>
    %c0_1 = arith.constant 0 : index
    %c0_2 = arith.constant 0 : index
    %1 = vector.load %arg2[%c0_1, %c0_2] : memref<64x128xf32, #tpu.memory_space<vmem>>, vector<64x128xf32>
    %cst = arith.constant dense<0.000000e+00> : vector<2x128xf32>
    %2 = tpu.matmul %0, %1, %cst {dimension_numbers = #tpu.dot_dimension_numbers<[1], [0], [0], [1], [0, 0, 1, 1], [], []>} : vector<2x64xf32>, vector<64x128xf32>, vector<2x128xf32> -> vector<2x128xf32>
    %c0_3 = arith.constant 0 : index
    %c0_4 = arith.constant 0 : index
    %3 = vector.load %arg3[%c0_3, %c0_4] : memref<1x128xf32, #tpu.memory_space<vmem>>, vector<1x128xf32>
    %4 = vector.broadcast %3 : vector<1x128xf32> to vector<2x128xf32>
    %5 = arith.addf %2, %4 : vector<2x128xf32>
    %cst_5 = arith.constant 0.000000e+00 : f32
    %6 = vector.broadcast %cst_5 : f32 to vector<2x128xf32>
    %7 = arith.maximumf %5, %6 : vector<2x128xf32>
    %c0_6 = arith.constant 0 : index
    %c0_7 = arith.constant 0 : index
    %8 = vector.load %arg4[%c0_6, %c0_7] : memref<128x4xf32, #tpu.memory_space<vmem>>, vector<128x4xf32>
    %cst_8 = arith.constant dense<0.000000e+00> : vector<2x4xf32>
    %9 = tpu.matmul %7, %8, %cst_8 {dimension_numbers = #tpu.dot_dimension_numbers<[1], [0], [0], [1], [0, 0, 1, 1], [], []>} : vector<2x128xf32>, vector<128x4xf32>, vector<2x4xf32> -> vector<2x4xf32>
    %c0_9 = arith.constant 0 : index
    %c0_10 = arith.constant 0 : index
    %10 = vector.load %arg5[%c0_9, %c0_10] : memref<1x4xf32, #tpu.memory_space<vmem>>, vector<1x4xf32>
    %11 = vector.broadcast %10 : vector<1x4xf32> to vector<2x4xf32>
    %12 = arith.addf %9, %11 : vector<2x4xf32>
    %c0_11 = arith.constant 0 : index
    %c0_12 = arith.constant 0 : index
    %13 = vector.load %arg6[%c0_11, %c0_12] : memref<2x4xf32, #tpu.memory_space<vmem>>, vector<2x4xf32>
    tpu.vector_store %arg6[%c0_11, %c0_12], %12 {strides = array<i32>} : memref<2x4xf32, #tpu.memory_space<vmem>>, vector<2x4xf32>,
    return
  }
  func.func @transform_0(%arg0: i32) -> (i32, i32) {
    %c0_i32 = arith.constant 0 : i32
    %c0_i32_0 = arith.constant 0 : i32
    return %arg0, %c0_i32 : i32, i32
  }
  func.func @transform_1(%arg0: i32) -> (i32, i32) {
    %c0_i32 = arith.constant 0 : i32
    %c0_i32_0 = arith.constant 0 : i32
    %c0_i32_1 = arith.constant 0 : i32
    return %c0_i32, %c0_i32_0 : i32, i32
  }
  func.func @transform_2(%arg0: i32) -> (i32, i32) {
    %c0_i32 = arith.constant 0 : i32
    %c0_i32_0 = arith.constant 0 : i32
    %c0_i32_1 = arith.constant 0 : i32
    return %c0_i32, %c0_i32_0 : i32, i32
  }
  func.func @transform_3(%arg0: i32) -> (i32, i32) {
    %c0_i32 = arith.constant 0 : i32
    %c0_i32_0 = arith.constant 0 : i32
    %c0_i32_1 = arith.constant 0 : i32
    return %c0_i32, %c0_i32_0 : i32, i32
  }
  func.func @transform_4(%arg0: i32) -> (i32, i32) {
    %c0_i32 = arith.constant 0 : i32
    %c0_i32_0 = arith.constant 0 : i32
    %c0_i32_1 = arith.constant 0 : i32
    return %c0_i32, %c0_i32_0 : i32, i32
  }
  func.func @transform_5(%arg0: i32) -> (i32, i32) {
    %c0_i32 = arith.constant 0 : i32
    %c0_i32_0 = arith.constant 0 : i32
    return %arg0, %c0_i32 : i32, i32
  }
}

</mosaic_0001>

<llo_original>
// kernel: tpu_custom_call.1
$region0: #{tpu_custom_call.1}
  #allocation0 [shape = 'u32[]', space=smem, size = 0x4, offset = 0x4, fixed_abs, tag = 'smem constant byte address 0x4 - core index']
  #allocation1 [shape = 'u32[72,128]{1,0:T(1,128)}', space=vmem, size = 0x9000, scoped, tag = 'internal scratch']
  %s0 = inlined_call_operand.vmem [shape: f32[2,64], index: 0, kind: input, shape index: {}]
  %s1 = inlined_call_operand.vmem [shape: f32[64,128], index: 1, kind: input, shape index: {}]
  %s2 = inlined_call_operand.vmem [shape: f32[1,128], index: 2, kind: input, shape index: {}]
  %s3 = inlined_call_operand.vmem [shape: f32[128,4], index: 3, kind: input, shape index: {}]
  %s4 = inlined_call_operand.vmem [shape: f32[1,4], index: 4, kind: input, shape index: {}]
  %s5 = inlined_call_operand.hbm [shape: f32[2,4], index: 5, kind: output, shape index: {}]
  %s6 = sld [smem:[#allocation0]]
  $region30: #{tpu_custom_call.1} parent=0
    _
  %s8 = ssub.s32 1, %s6
  %s9 = scalar_select 0, %s8, %s6
  $region1: #{tpu_custom_call.1} parent=0
    #allocation2 [shape = 'u8[1024]{0}', space=vmem, size = 0x400, scoped, tag = 'output window, operand 0, single buffered']
    #allocation3 [shape = 's32[1]{0}', space=sflag, size = 0x4, scoped, tag = 'scoped memory for tpu_custom_call.1']
    %10 = vsyncpa [#allocation3], 0
    // Predicated region
    $region2: #{tpu_custom_call.1} parent=1 // pred_check
      _
    $region3: #{tpu_custom_call.1} parent=1 // pred_check_branch
      %12 = sbr.rel (0) target = $region5
    $region4: #{tpu_custom_call.1} parent=1 // pred_region
      _
    $region5: #{tpu_custom_call.1} parent=1 // pred_fallthru
      _
    // Predicated region
    $region6: #{tpu_custom_call.1} parent=1 // pred_check
      _
    $region7: #{tpu_custom_call.1} parent=1 // pred_check_branch
      %14 = sbr.rel (0) target = $region9
    $region8: #{tpu_custom_call.1} parent=1 // pred_region
      _
    $region9: #{tpu_custom_call.1} parent=1 // pred_fallthru
      _
    // Predicated region
    $region10: #{tpu_custom_call.1} parent=1 // pred_check
      _
    $region11: #{tpu_custom_call.1} parent=1 // pred_check_branch
      %16 = sbr.rel (0) target = $region13
    $region12: #{tpu_custom_call.1} parent=1 // pred_region
      _
    $region13: #{tpu_custom_call.1} parent=1 // pred_fallthru
      _
    // Predicated region
    $region14: #{tpu_custom_call.1} parent=1 // pred_check
      _
    $region15: #{tpu_custom_call.1} parent=1 // pred_check_branch
      %18 = sbr.rel (0) target = $region17
    $region16: #{tpu_custom_call.1} parent=1 // pred_region
      _
    $region17: #{tpu_custom_call.1} parent=1 // pred_fallthru
      _
    // Predicated region
    $region18: #{tpu_custom_call.1} parent=1 // pred_check
      _
    $region19: #{tpu_custom_call.1} parent=1 // pred_check_branch
      %20 = sbr.rel (0) target = $region21
    $region20: #{tpu_custom_call.1} parent=1 // pred_region
      _
    $region21: #{tpu_custom_call.1} parent=1 // pred_fallthru
      _
    %v21 = vld [vmem:[%s0] sm:$0x3]
    %v22 = vld [vmem:[%s1] sm:$0xff]
    %v23 = vld [vmem:[%s1 + $0x8] sm:$0xff]
    %v24 = vld [vmem:[%s1 + $0x10] sm:$0xff]
    %v25 = vld [vmem:[%s1 + $0x18] sm:$0xff]
    %v26 = vld [vmem:[%s1 + $0x20] sm:$0xff]
    %v27 = vld [vmem:[%s1 + $0x28] sm:$0xff]
    %v28 = vld [vmem:[%s1 + $0x30] sm:$0xff]
    %v29 = vld [vmem:[%s1 + $0x38] sm:$0xff]
    %v30 = vld [vmem:[%s2] sm:$0x1]
    %v32 = vperm.slane %v30, 0
    %vm34 = vcmask 523264
    %v36 = vsel %vm34, %v21, 0
    %38 = vmatpush.msra.mxu0 0.0
    %39 = vmatpush.msra.mxu0 0.0
    %40 = vmatpush.msra.mxu0 0.0
    %41 = vmatpush.msra.mxu0 0.0
    %42 = vmatpush.msra.mxu0 0.0
    %43 = vmatpush.msra.mxu0 0.0
    %44 = vmatpush.msra.mxu0 0.0
    %45 = vmatpush.msra.mxu0 0.0
    %46 = vmatpush.msra.mxu0 %v29
    %47 = vmatpush.msra.mxu0 %v28
    %48 = vmatpush.msra.mxu0 %v27
    %49 = vmatpush.msra.mxu0 %v26
    %50 = vmatpush.msra.mxu0 %v25
    %51 = vmatpush.msra.mxu0 %v24
    %52 = vmatpush.msra.mxu0 %v23
    %53 = vmatpush.msra.mxu0 %v22
    %54 = vmatmul.f32.gmra.mxu0 %v36
    %v55 = vpop.f32.mrf.mxu0
    %v56 = vadd.f32 %v32, %v55
    %57 = vdwg.mxu0
    %v58 = vmax.f32 %v56, 0.0
    %v59 = vld [vmem:[%s3] sm:$0xff]
    %v60 = vld [vmem:[%s3 + $0x8] sm:$0xff]
    %v61 = vld [vmem:[%s3 + $0x10] sm:$0xff]
    %v62 = vld [vmem:[%s3 + $0x18] sm:$0xff]
    %v63 = vld [vmem:[%s3 + $0x20] sm:$0xff]
    %v64 = vld [vmem:[%s3 + $0x28] sm:$0xff]
    %v65 = vld [vmem:[%s3 + $0x30] sm:$0xff]
    %v66 = vld [vmem:[%s3 + $0x38] sm:$0xff]
    %v67 = vld [vmem:[%s3 + $0x40] sm:$0xff]
    %v68 = vld [vmem:[%s3 + $0x48] sm:$0xff]
    %v69 = vld [vmem:[%s3 + $0x50] sm:$0xff]
    %v70 = vld [vmem:[%s3 + $0x58] sm:$0xff]
    %v71 = vld [vmem:[%s3 + $0x60] sm:$0xff]
    %v72 = vld [vmem:[%s3 + $0x68] sm:$0xff]
    %v73 = vld [vmem:[%s3 + $0x70] sm:$0xff]
    %v74 = vld [vmem:[%s3 + $0x78] sm:$0xff]
    %v75 = vld [vmem:[%s4] sm:$0x1]
    %v77 = vperm.slane %v75, 0
    %79 = vmatpush.msra.mxu0 %v74
    %80 = vmatpush.msra.mxu0 %v73
    %81 = vmatpush.msra.mxu0 %v72
    %82 = vmatpush.msra.mxu0 %v71
    %83 = vmatpush.msra.mxu0 %v70
    %84 = vmatpush.msra.mxu0 %v69
    %85 = vmatpush.msra.mxu0 %v68
    %86 = vmatpush.msra.mxu0 %v67
    %87 = vmatpush.msra.mxu0 %v66
    %88 = vmatpush.msra.mxu0 %v65
    %89 = vmatpush.msra.mxu0 %v64
    %90 = vmatpush.msra.mxu0 %v63
    %91 = vmatpush.msra.mxu0 %v62
    %92 = vmatpush.msra.mxu0 %v61
    %93 = vmatpush.msra.mxu0 %v60
    %94 = vmatpush.msra.mxu0 %v59
    %95 = vmatmul.f32.gmra.mxu0 %v58
    %v96 = vpop.f32.mrf.mxu0
    %v97 = vadd.f32 %v77, %v96
    %98 = vdwg.mxu0
    %vm99 = vcmask 25600
    %100 = vst.msk [vmem:[#allocation2] sm:$0x3] %vm99, %v97
    // Predicated region
    $region22: #{tpu_custom_call.1} parent=1 // pred_check
      _
    $region23: #{tpu_custom_call.1} parent=1 // pred_check_branch
      %102 = sbr.rel (0) target = $region25
    $region24: #{tpu_custom_call.1} parent=1 // pred_region
      %104 = vsyncadd [#allocation3], 0
      %s106 = sshll.u32 [#allocation2], 4
      %s107 = int_to_ptr.vmem [resolvable:$true] %s106
      %s108 = sshll.u32 %s5, 4
      %s109 = int_to_ptr.hbm [resolvable:$true] %s108
      %111 = dma.vmem_to_hbm [thread:$0]  %s107, 32, %s109, [#allocation3]
    $region25: #{tpu_custom_call.1} parent=1 // pred_fallthru
      _
    // Predicated region
    $region26: #{tpu_custom_call.1} parent=1 // pred_check
      _
    $region27: #{tpu_custom_call.1} parent=1 // pred_check_branch
      %113 = sbr.rel (0) target = $region29
    $region28: #{tpu_custom_call.1} parent=1 // pred_region
      %115 = dma.done [#allocation3], 32
    $region29: #{tpu_custom_call.1} parent=1 // pred_fallthru
      _
    %116 = vsyncpa [#allocation3], 1

</llo_original>
